<compile_context>
chip_gen: v7x
topology: tpu7x:2x2x1
jax: 0.10.0
libtpu: 0.0.40
codegen_flags: <defaults>
</compile_context>

<pallas_src>
import functools

import jax
import jax.numpy as jnp
import numpy as np
from jax import lax
from jax.experimental import pallas as pl
from jax.experimental.pallas import tpu as pltpu

BN_EPS = 1e-5
VMEM_LIMIT = 32 * 1024 * 1024          # conservative for v7x (64 MiB / TC)
BLOCK_BUDGET = 4 * 1024 * 1024         # per-step main-block budget used to pick TH


def _pick_th(h, row_bytes):
    """Largest even divisor of h whose per-step footprint fits the block budget."""
    for th in range(h, 1, -1):
        if th % 2 == 0 and h % th == 0 and th * row_bytes <= BLOCK_BUDGET:
            return th
    return 2


# --------------------- shared BN + ReLU + 2x2-pool epilogue ------------------ #

def _bn_relu_pool_store(acc, s_ref, b_ref, out_ref, ys_ref, *, th, w, cout):
    """acc: (th*w, cout) f32 conv output, rows in row-major (row, col) pixel order.

    Applies the folded inference-BN affine + ReLU, then a fused 2x2 max-pool and
    stores the (th//2, w//2, cout) pooled block.
    """
    wo = w // 2
    half = (th * w) // 2
    # Single affine + ReLU on the whole slab (broadcast happens once per block).
    ys_ref[...] = jnp.maximum(acc * s_ref[...] + b_ref[...], 0.0)
    # Horizontal 2:1 pool: adjacent flattened rows are adjacent columns of the same
    # image row (w is even) -> pair them with stride-2 sublane reads of the scratch.
    hmax = jnp.maximum(ys_ref[pl.ds(0, half, stride=2), :],
                       ys_ref[pl.ds(1, half, stride=2), :])          # (th*wo, cout)
    # Vertical 2:1 pool: rows 2p and 2p+1 of pooled column q are wo apart, so split
    # into (th//2, 2*wo) and take the max of the two contiguous halves.
    hmax = hmax.reshape(th // 2, 2 * wo, cout)
    pooled = jnp.maximum(hmax[:, 0:wo, :], hmax[:, wo:2 * wo, :])     # (th//2, wo, cout)
    out_ref[0] = pooled.astype(out_ref.dtype)


# ------------- layer 1: 3x3 conv folded to pointwise (K = 27) + pool ---------- #

def _conv1x1_bn_relu_pool_kernel(x_ref, w_ref, s_ref, b_ref, out_ref, ys_ref,
                                 *, th, w, kc, cout):
    x2 = x_ref[0].reshape(th * w, kc)                 # (th*w, 27)
    acc = jnp.dot(x2, w_ref[...], preferred_element_type=jnp.float32)
    _bn_relu_pool_store(acc, s_ref, b_ref, out_ref, ys_ref, th=th, w=w, cout=cout)


def conv1_taps_bn_relu_pool(x, w27, scale, bias):
    """First conv layer: all 9 taps folded into the contraction dim (Cin=3 -> K=27)."""
    n, h, w, cin = x.shape
    kc, cout = w27.shape
    assert kc == 9 * cin and h % 2 == 0 and w % 2 == 0
    xp = jnp.pad(x, ((0, 0), (1, 1), (1, 1), (0, 0)))
    x27 = jnp.concatenate(
        [xp[:, dy:dy + h, dx:dx + w, :] for dy in range(3) for dx in range(3)],
        axis=-1)                                      # (n, h, w, 27) bf16
    th = _pick_th(h, w * (kc * 2 + cout * 4))
    kernel = functools.partial(_conv1x1_bn_relu_pool_kernel,
                               th=th, w=w, kc=kc, cout=cout)
    return pl.pallas_call(
        kernel,
        out_shape=jax.ShapeDtypeStruct((n, h // 2, w // 2, cout), jnp.bfloat16),
        grid=(n, h // th),
        in_specs=[pl.BlockSpec((1, th, w, kc), lambda b, i: (b, i, 0, 0)),
                  pl.BlockSpec((kc, cout), lambda b, i: (0, 0)),
                  pl.BlockSpec((1, cout), lambda b, i: (0, 0)),
                  pl.BlockSpec((1, cout), lambda b, i: (0, 0))],
        out_specs=pl.BlockSpec((1, th // 2, w // 2, cout),
                               lambda b, i: (b, i, 0, 0)),
        scratch_shapes=[pltpu.VMEM((th * w, cout), jnp.float32)],
        compiler_params=pltpu.CompilerParams(
            dimension_semantics=("parallel", "parallel"),
            vmem_limit_bytes=VMEM_LIMIT),
    )(x27, w27, scale, bias)


# ------------------ layers 2/3: 3x3 conv (9 big dots) + pool ------------------ #

def _conv3x3_bn_relu_pool_kernel(xm_ref, xh_ref, w_ref, s_ref, b_ref, out_ref,
                                 xs_ref, ys_ref, *, th, w, cin, cout):
    # Assemble the (th+2)-row padded window (main rows + 2-row halo) in VMEM.
    xs_ref[0:th, :, :] = xm_ref[0]
    xs_ref[th:th + 2, :, :] = xh_ref[0]
    # One big dot per tap (M = th*w, K = cin); first dot seeds the accumulator.
    acc = None
    for dy in range(3):
        for dx in range(3):
            slab = xs_ref[dy:dy + th, dx:dx + w, :].reshape(th * w, cin)
            part = jnp.dot(slab, w_ref[3 * dy + dx],
                           preferred_element_type=jnp.float32)
            acc = part if acc is None else acc + part
    _bn_relu_pool_store(acc, s_ref, b_ref, out_ref, ys_ref, th=th, w=w, cout=cout)


def conv3x3_bn_relu_pool(x, w9, scale, bias):
    """x: (N, H, W, Cin) bf16 -> (N, H/2, W/2, Cout) bf16 (conv+BN+ReLU+maxpool2)."""
    n, h, w, cin = x.shape
    cout = w9.shape[-1]
    assert h % 2 == 0 and w % 2 == 0
    wp = w + 2
    xp = jnp.pad(x, ((0, 0), (1, 1), (1, 1), (0, 0)))   # (n, h+2, w+2, cin)
    th = _pick_th(h, wp * cin * 2 + w * cout * 4)
    kernel = functools.partial(_conv3x3_bn_relu_pool_kernel,
                               th=th, w=w, cin=cin, cout=cout)
    return pl.pallas_call(
        kernel,
        out_shape=jax.ShapeDtypeStruct((n, h // 2, w // 2, cout), jnp.bfloat16),
        grid=(n, h // th),
        in_specs=[pl.BlockSpec((1, th, wp, cin), lambda b, i: (b, i, 0, 0)),
                  pl.BlockSpec((1, 2, wp, cin),
                               lambda b, i: (b, i * (th // 2) + th // 2, 0, 0)),
                  pl.BlockSpec((9, cin, cout), lambda b, i: (0, 0, 0)),
                  pl.BlockSpec((1, cout), lambda b, i: (0, 0)),
                  pl.BlockSpec((1, cout), lambda b, i: (0, 0))],
        out_specs=pl.BlockSpec((1, th // 2, w // 2, cout),
                               lambda b, i: (b, i, 0, 0)),
        scratch_shapes=[pltpu.VMEM((th + 2, wp, cin), jnp.bfloat16),
                        pltpu.VMEM((th * w, cout), jnp.float32)],
        compiler_params=pltpu.CompilerParams(
            dimension_semantics=("parallel", "parallel"),
            vmem_limit_bytes=VMEM_LIMIT),
    )(xp, xp, w9, scale, bias)


# ----------------- fused classifier: FC1 + ReLU + (Dropout) + FC2 ------------- #

def _mlp_kernel(x_ref, w1_ref, b1_ref, w2_ref, b2_ref, out_ref, acc_ref):
    @pl.when(pl.program_id(1) == 0)
    def _init():
        acc_ref[...] = jnp.zeros_like(acc_ref)

    acc_ref[...] += jnp.dot(x_ref[...], w1_ref[...],
                            preferred_element_type=jnp.float32)

    @pl.when(pl.program_id(1) == pl.num_programs(1) - 1)
    def _finalize():
        h = jnp.maximum(acc_ref[...] + b1_ref[...], 0.0).astype(jnp.bfloat16)
        logits = jnp.dot(h, w2_ref[...], preferred_element_type=jnp.float32)
        out_ref[...] = (logits + b2_ref[...]).astype(out_ref.dtype)


def mlp_head(feat, w1t, b1, w2p, b2p, *, block_m=256, block_k=2048):
    """Fused (M, K) @ (K, 256) + b1 -> ReLU -> @ (256, ncp) + b2 in one pallas_call."""
    m, k = feat.shape
    kk, d1 = w1t.shape
    assert k == kk
    ncp = w2p.shape[1]
    tm = m if m <= block_m else block_m
    tk = min(k, block_k)
    while k % tk:          # flat is always a multiple of 128, so this terminates >= 128
        tk -= 128
    grid = (pl.cdiv(m, tm), k // tk)
    return pl.pallas_call(
        _mlp_kernel,
        out_shape=jax.ShapeDtypeStruct((m, ncp), jnp.float32),
        grid=grid,
        in_specs=[pl.BlockSpec((tm, tk), lambda i, j: (i, j)),
                  pl.BlockSpec((tk, d1), lambda i, j: (j, 0)),
                  pl.BlockSpec((1, d1), lambda i, j: (0, 0)),
                  pl.BlockSpec((d1, ncp), lambda i, j: (0, 0)),
                  pl.BlockSpec((1, ncp), lambda i, j: (0, 0))],
        out_specs=pl.BlockSpec((tm, ncp), lambda i, j: (i, 0)),
        scratch_shapes=[pltpu.VMEM((tm, d1), jnp.float32)],
        compiler_params=pltpu.CompilerParams(
            dimension_semantics=("parallel", "arbitrary"),
            vmem_limit_bytes=VMEM_LIMIT),
    )(feat, w1t, b1, w2p, b2p)


# ------------------------------- parameters ----------------------------------- #

def init_params(key, num_classes, img_size):
    """PyTorch-layout parameters (same shapes as the nn.Module)."""
    conv_cfg = [(3, 32), (32, 64), (64, 128)]
    keys = iter(jax.random.split(key, 16))
    convs = []
    for cin, cout in conv_cfg:
        convs.append(dict(
            w=0.1 * jax.random.normal(next(keys), (cout, cin, 3, 3), jnp.float32),
            b=0.1 * jax.random.normal(next(keys), (cout,), jnp.float32),
            gamma=1.0 + 0.1 * jax.random.normal(next(keys), (cout,), jnp.float32),
            beta=0.1 * jax.random.normal(next(keys), (cout,), jnp.float32),
            mean=jnp.zeros((cout,), jnp.float32),   # PyTorch-init running stats
            var=jnp.ones((cout,), jnp.float32),
        ))
    flat = 128 * (img_size // 8) * (img_size // 8)
    w1 = 0.05 * jax.random.normal(next(keys), (256, flat), jnp.float32)
    b1 = 0.05 * jax.random.normal(next(keys), (256,), jnp.float32)
    w2 = 0.05 * jax.random.normal(next(keys), (num_classes, 256), jnp.float32)
    b2 = 0.05 * jax.random.normal(next(keys), (num_classes,), jnp.float32)
    return dict(convs=convs, w1=w1, b1=b1, w2=w2, b2=b2, num_classes=num_classes)


def prepare_params(params):
    """One-time conversion to kernel layouts: tap-folded / tap-major bf16 conv weights,
    folded BN affine, NHWC-permuted + pre-transposed FC1 weights, and 128-lane padded
    logits weights/bias."""
    lane = 128

    def fold_bn(p):
        cout = p["w"].shape[0]
        scale = (p["gamma"] / jnp.sqrt(p["var"] + BN_EPS)).astype(jnp.float32)
        bias = ((p["b"] - p["mean"]) * scale + p["beta"]).astype(jnp.float32)
        return scale.reshape(1, cout), bias.reshape(1, cout)

    c1, c2, c3 = params["convs"]
    # Layer 1: fold all 9 taps into the contraction dim -> (27, 32).
    cout1, cin1 = c1["w"].shape[0], c1["w"].shape[1]
    w27 = (jnp.transpose(c1["w"], (2, 3, 1, 0))
           .reshape(9 * cin1, cout1).astype(jnp.bfloat16))
    s1, e1 = fold_bn(c1)
    conv1 = dict(w=w27, scale=s1, bias=e1)
    # Layers 2/3: tap-major (9, Cin, Cout).
    convs23 = []
    for p in (c2, c3):
        cout, cin = p["w"].shape[0], p["w"].shape[1]
        w9 = (jnp.transpose(p["w"], (2, 3, 1, 0))
              .reshape(9, cin, cout).astype(jnp.bfloat16))
        s, e = fold_bn(p)
        convs23.append(dict(w=w9, scale=s, bias=e))
    # FC1: permute columns from NCHW-flatten order to NHWC-flatten order, transpose once.
    d1, flat = params["w1"].shape
    s_sp = int(round((flat // 128) ** 0.5))
    w1_nhwc = (params["w1"].reshape(d1, 128, s_sp, s_sp)
               .transpose(0, 2, 3, 1).reshape(d1, flat))
    w1t = jnp.transpose(w1_nhwc).astype(jnp.bfloat16)          # (flat, 256)
    b1 = params["b1"].reshape(1, -1).astype(jnp.float32)
    # FC2: pad logits dim to a multiple of 128 lanes (dense stores).
    nc = params["num_classes"]
    ncp = ((nc + lane - 1) // lane) * lane
    w2p = (jnp.zeros((d1, ncp), jnp.float32)
           .at[:, :nc].set(params["w2"].T).astype(jnp.bfloat16))
    b2p = jnp.zeros((1, ncp), jnp.float32).at[0, :nc].set(params["b2"])
    return dict(conv1=conv1, convs23=convs23, w1t=w1t, b1=b1, w2p=w2p, b2p=b2p,
                num_classes=nc)


# --------------------------------- forward ------------------------------------ #

def cnn02_forward(x_nchw, prep):
    x = jnp.transpose(x_nchw, (0, 2, 3, 1)).astype(jnp.bfloat16)   # NCHW -> NHWC
    c1 = prep["conv1"]
    x = conv1_taps_bn_relu_pool(x, c1["w"], c1["scale"], c1["bias"])
    for p in prep["convs23"]:
        x = conv3x3_bn_relu_pool(x, p["w"], p["scale"], p["bias"])
    # w1 columns were permuted to NHWC-flatten order, so no transpose is needed here.
    feat = x.reshape(x.shape[0], -1)
    # TODO(synk): nn.Dropout(0.5) is identity in eval/inference mode; training-mode RNG mask not implemented.
    logits = mlp_head(feat, prep["w1t"], prep["b1"], prep["w2p"], prep["b2p"])
    return logits[:, :prep["num_classes"]]


def cnn02_reference(x_nchw, params):
    """Pure-JAX reference with matching bf16 layer boundaries (correctness check)."""
    x = jnp.transpose(x_nchw, (0, 2, 3, 1)).astype(jnp.bfloat16)
    for p in params["convs"]:
        w_hwio = jnp.transpose(p["w"], (2, 3, 1, 0)).astype(jnp.bfloat16)
        z = lax.conv_general_dilated(x, w_hwio, (1, 1), "SAME",
                                     dimension_numbers=("NHWC", "HWIO", "NHWC"),
                                     preferred_element_type=jnp.float32)
        scale = p["gamma"] / jnp.sqrt(p["var"] + BN_EPS)
        y = (z + p["b"] - p["mean"]) * scale + p["beta"]
        y = jnp.maximum(y, 0.0)
        y = lax.reduce_window(y, -jnp.inf, lax.max, (1, 2, 2, 1), (1, 2, 2, 1), "VALID")
        x = y.astype(jnp.bfloat16)
    n = x.shape[0]
    feat = jnp.transpose(x, (0, 3, 1, 2)).reshape(n, -1)           # PyTorch NCHW flatten
    h = jnp.dot(feat, params["w1"].T.astype(jnp.bfloat16),
                preferred_element_type=jnp.float32) + params["b1"]
    h = jnp.maximum(h, 0.0).astype(jnp.bfloat16)
    logits = jnp.dot(h, params["w2"].T.astype(jnp.bfloat16),
                     preferred_element_type=jnp.float32) + params["b2"]
    return logits


if __name__ == "__main__":
    num_classes, img_size, batch = 10, 16, 2
    key = jax.random.PRNGKey(0)
    pkey, xkey = jax.random.split(key)
    params = init_params(pkey, num_classes, img_size)
    prep = prepare_params(params)
    x = jax.random.normal(xkey, (batch, 3, img_size, img_size), jnp.float32)

    out = jax.block_until_ready(cnn02_forward(x, prep))
    ref = jax.block_until_ready(cnn02_reference(x, params))

    assert out.shape == (batch, num_classes)
    np.testing.assert_allclose(np.asarray(out), np.asarray(ref), rtol=1e-2, atol=1e-2)
    print("KERNEL_OK")
</pallas_src>

<mosaic_0001>
module attributes {stable_mosaic.version = 11 : i64} {
  func.func @_conv1x1_bn_relu_pool_kernel(%arg0: i32, %arg1: i32, %arg2: memref<1x16x16x27xbf16, #tpu.memory_space<vmem>>, %arg3: memref<27x32xbf16, #tpu.memory_space<vmem>>, %arg4: memref<1x32xf32, #tpu.memory_space<vmem>>, %arg5: memref<1x32xf32, #tpu.memory_space<vmem>>, %arg6: memref<1x8x8x32xbf16, #tpu.memory_space<vmem>>, %arg7: memref<256x32xf32, #tpu.memory_space<vmem>>) attributes {dimension_semantics = [#tpu.dimension_semantics<parallel>, #tpu.dimension_semantics<parallel>], iteration_bounds = array<i64: 2, 1>, scalar_prefetch = 0 : i64, scratch_operands = 1 : i64, tpu.core_type = #tpu.core_type<tc>, window_params = [{transform_indices = @transform_0, window_bounds = array<i64: 1, 16, 16, 27>}, {pipeline_mode = #tpu.pipeline_mode<synchronous>, transform_indices = @transform_1, window_bounds = array<i64: 27, 32>}, {pipeline_mode = #tpu.pipeline_mode<synchronous>, transform_indices = @transform_2, window_bounds = array<i64: 1, 32>}, {pipeline_mode = #tpu.pipeline_mode<synchronous>, transform_indices = @transform_3, window_bounds = array<i64: 1, 32>}, {transform_indices = @transform_4, window_bounds = array<i64: 1, 8, 8, 32>}]} {
    %c0 = arith.constant 0 : index
    %c0_0 = arith.constant 0 : index
    %c0_1 = arith.constant 0 : index
    %c0_2 = arith.constant 0 : index
    %0 = vector.load %arg2[%c0, %c0_0, %c0_1, %c0_2] : memref<1x16x16x27xbf16, #tpu.memory_space<vmem>>, vector<1x16x16x27xbf16>
    %1 = vector.shape_cast %0 : vector<1x16x16x27xbf16> to vector<16x16x27xbf16>
    %2 = vector.shape_cast %1 : vector<16x16x27xbf16> to vector<256x27xbf16>
    %c0_3 = arith.constant 0 : index
    %c0_4 = arith.constant 0 : index
    %3 = vector.load %arg3[%c0_3, %c0_4] : memref<27x32xbf16, #tpu.memory_space<vmem>>, vector<27x32xbf16>
    %cst = arith.constant dense<0.000000e+00> : vector<256x32xf32>
    %4 = tpu.matmul %2, %3, %cst {dimension_numbers = #tpu.dot_dimension_numbers<[1], [0], [0], [1], [0, 0, 1, 1], [], []>} : vector<256x27xbf16>, vector<27x32xbf16>, vector<256x32xf32> -> vector<256x32xf32>
    %c0_5 = arith.constant 0 : index
    %c0_6 = arith.constant 0 : index
    %5 = vector.load %arg4[%c0_5, %c0_6] : memref<1x32xf32, #tpu.memory_space<vmem>>, vector<1x32xf32>
    %6 = vector.broadcast %5 : vector<1x32xf32> to vector<256x32xf32>
    %7 = arith.mulf %4, %6 : vector<256x32xf32>
    %c0_7 = arith.constant 0 : index
    %c0_8 = arith.constant 0 : index
    %8 = vector.load %arg5[%c0_7, %c0_8] : memref<1x32xf32, #tpu.memory_space<vmem>>, vector<1x32xf32>
    %9 = vector.broadcast %8 : vector<1x32xf32> to vector<256x32xf32>
    %10 = arith.addf %7, %9 : vector<256x32xf32>
    %cst_9 = arith.constant 0.000000e+00 : f32
    %11 = vector.broadcast %cst_9 : f32 to vector<256x32xf32>
    %12 = arith.maximumf %10, %11 : vector<256x32xf32>
    %c0_10 = arith.constant 0 : index
    %c0_11 = arith.constant 0 : index
    %13 = vector.load %arg7[%c0_10, %c0_11] : memref<256x32xf32, #tpu.memory_space<vmem>>, vector<256x32xf32>
    tpu.vector_store %arg7[%c0_10, %c0_11], %12 {strides = array<i32>} : memref<256x32xf32, #tpu.memory_space<vmem>>, vector<256x32xf32>,
    %c0_12 = arith.constant 0 : index
    %c0_13 = arith.constant 0 : index
    %14 = tpu.strided_load %arg7[%c0_12, %c0_13] {strides = array<i32: 2, 1>} : memref<256x32xf32, #tpu.memory_space<vmem>>, vector<128x32xf32>
    %c1 = arith.constant 1 : index
    %c0_14 = arith.constant 0 : index
    %15 = tpu.strided_load %arg7[%c1, %c0_14] {strides = array<i32: 2, 1>} : memref<256x32xf32, #tpu.memory_space<vmem>>, vector<128x32xf32>
    %16 = arith.maximumf %14, %15 : vector<128x32xf32>
    %17 = vector.shape_cast %16 : vector<128x32xf32> to vector<8x16x32xf32>
    %18 = vector.extract_strided_slice %17 {offsets = [0, 0, 0], sizes = [8, 8, 32], strides = [1, 1, 1]} : vector<8x16x32xf32> to vector<8x8x32xf32>
    %19 = vector.extract_strided_slice %17 {offsets = [0, 8, 0], sizes = [8, 8, 32], strides = [1, 1, 1]} : vector<8x16x32xf32> to vector<8x8x32xf32>
    %20 = arith.maximumf %18, %19 : vector<8x8x32xf32>
    %21 = arith.truncf %20 : vector<8x8x32xf32> to vector<8x8x32xbf16>
    %c0_15 = arith.constant 0 : index
    %c0_16 = arith.constant 0 : index
    %c0_17 = arith.constant 0 : index
    %c0_18 = arith.constant 0 : index
    %22 = vector.load %arg6[%c0_15, %c0_16, %c0_17, %c0_18] : memref<1x8x8x32xbf16, #tpu.memory_space<vmem>>, vector<1x8x8x32xbf16>
    %23 = vector.shape_cast %22 : vector<1x8x8x32xbf16> to vector<8x8x32xbf16>
    %24 = vector.shape_cast %21 : vector<8x8x32xbf16> to vector<1x8x8x32xbf16>
    tpu.vector_store %arg6[%c0_15, %c0_16, %c0_17, %c0_18], %24 {strides = array<i32>} : memref<1x8x8x32xbf16, #tpu.memory_space<vmem>>, vector<1x8x8x32xbf16>,
    return
  }
  func.func @transform_0(%arg0: i32, %arg1: i32) -> (i32, i32, i32, i32) {
    %c0_i32 = arith.constant 0 : i32
    %c0_i32_0 = arith.constant 0 : i32
    %c0_i32_1 = arith.constant 0 : i32
    return %arg0, %arg1, %c0_i32, %c0_i32_0 : i32, i32, i32, i32
  }
  func.func @transform_1(%arg0: i32, %arg1: i32) -> (i32, i32) {
    %c0_i32 = arith.constant 0 : i32
    %c0_i32_0 = arith.constant 0 : i32
    %c0_i32_1 = arith.constant 0 : i32
    return %c0_i32, %c0_i32_0 : i32, i32
  }
  func.func @transform_2(%arg0: i32, %arg1: i32) -> (i32, i32) {
    %c0_i32 = arith.constant 0 : i32
    %c0_i32_0 = arith.constant 0 : i32
    %c0_i32_1 = arith.constant 0 : i32
    return %c0_i32, %c0_i32_0 : i32, i32
  }
  func.func @transform_3(%arg0: i32, %arg1: i32) -> (i32, i32) {
    %c0_i32 = arith.constant 0 : i32
    %c0_i32_0 = arith.constant 0 : i32
    %c0_i32_1 = arith.constant 0 : i32
    return %c0_i32, %c0_i32_0 : i32, i32
  }
  func.func @transform_4(%arg0: i32, %arg1: i32) -> (i32, i32, i32, i32) {
    %c0_i32 = arith.constant 0 : i32
    %c0_i32_0 = arith.constant 0 : i32
    %c0_i32_1 = arith.constant 0 : i32
    return %arg0, %arg1, %c0_i32, %c0_i32_0 : i32, i32, i32, i32
  }
}

</mosaic_0001>

<llo_original>
// kernel: tpu_custom_call.1
$region0: #{tpu_custom_call.1}
  #allocation0 [shape = 'u32[]', space=smem, size = 0x4, offset = 0x4, fixed_abs, tag = 'smem constant byte address 0x4 - core index']
  #allocation1 [shape = 'u32[144,128]{1,0:T(1,128)}', space=vmem, size = 0x12000, scoped, tag = 'internal scratch']
  #allocation2 [shape = 'f32[256,32]{1,0:T(8,128)}', space=vmem, size = 0x20000, scoped, tag = 'scratch operand']
  %s0 = inlined_call_operand.hbm [shape: bf16[2,16,16,27], index: 0, kind: input, shape index: {}]
  %s1 = inlined_call_operand.hbm [shape: bf16[27,32], index: 1, kind: input, shape index: {}]
  %s2 = inlined_call_operand.vmem [shape: f32[1,32], index: 2, kind: input, shape index: {}]
  %s3 = inlined_call_operand.vmem [shape: f32[1,32], index: 3, kind: input, shape index: {}]
  %s4 = inlined_call_operand.hbm [shape: bf16[2,8,8,32], index: 4, kind: output, shape index: {}]
  %s5 = sld [smem:[#allocation0]]
  $region57: #{tpu_custom_call.1} parent=0
    _
  %s7 = ssub.s32 1, %s5
  %s8 = scalar_select 0, %s7, %s5
  $region1: #{tpu_custom_call.1} parent=0
    #allocation3 [shape = 'u8[131072]{0}', space=vmem, size = 0x20000, scoped, tag = 'input window, operand 0']
    #allocation4 [shape = 's32[2]{0}', space=sflag, size = 0x8, scoped, tag = 'scoped memory for tpu_custom_call.1']
    #allocation5 [shape = 's32[2]{0}', space=sflag, size = 0x8, scoped, tag = 'scoped memory for tpu_custom_call.1']
    #allocation6 [shape = 'u8[8192]{0}', space=vmem, size = 0x2000, scoped, tag = 'input window, operand 1, single buffered']
    #allocation7 [shape = 's32[1]{0}', space=sflag, size = 0x4, scoped, tag = 'scoped memory for tpu_custom_call.1']
    #allocation8 [shape = 'u8[32768]{0}', space=vmem, size = 0x8000, scoped, tag = 'output window, operand 0']
    %9 = vsyncpa [#allocation4], 0
    %s10 = scalar_lea.sflag [#allocation4], 1
    %11 = vsyncpa %s10, 0
    %12 = vsyncpa [#allocation7], 0
    %13 = vsyncpa [#allocation5], 0
    %s14 = scalar_lea.sflag [#allocation5], 1
    %15 = vsyncpa %s14, 0
    loop: start=0, step=1, limit=4
    $region2: #{tpu_custom_call.1} parent=1 // loop_pre_header
      _
    $region3: #{tpu_custom_call.1} parent=1 // loop_header
      %s17 = sphi 0, %s21
      %p18 = scmp.ge.s32.totalorder %s17, 4
      %s24 = sphi 0, %s36
      %s25 = sphi 0, %s32
      %s26 = sphi 0, %s24
      %s27 = sphi 0, %s25
      %s28 = sphi 0, %s26
      %s29 = sphi 0, %s27
      %s41 = sphi 0, %s43
      %s44 = sphi 0, %s41
      %s45 = sphi 0, %s44
      %s61 = sphi 0, %s45
      %s65 = sphi 0, %s65
      %s67 = sphi 0, %s65
      %s68 = sphi 0, %s67
      %s82 = sphi 0, %s68
      %s86 = sphi 0, %s86
      %s88 = sphi 0, %s86
      %s89 = sphi 0, %s88
      %s103 = sphi 0, %s89
      %s107 = sphi 0, %s107
      %s109 = sphi 0, %s107
      %s110 = sphi 0, %s109
      %s124 = sphi 0, %s110
      %s132 = sphi 0, %s134
      %s135 = sphi 0, %s132
      %s136 = sphi 0, %s135
      %s152 = sphi 0, %s136
    $region4: #{tpu_custom_call.1} parent=1 // loop_header_branch
      %20 = sbr.rel (%p18) target = $region8
    $region5: #{tpu_custom_call.1} parent=1 // loop_body
      %s22 = ssub.s32 %s17, 1
      %s23 = ssub.s32 %s17, 2
      %s30 = sadd.s32 1, %s25
      %p31 = scmp.ge.s32.totalorder %s30, 1
      %s32 = scalar_select %p31, 0, %s30
      %s33 = sadd.s32 1, %s24
      %s34 = scalar_select %p31, %s33, %s24
      %p35 = scmp.ge.s32.totalorder %s34, 2
      %s36 = scalar_select %p35, 0, %s34
      %s37 = ssub.s32 %s24, %s36
      %s38 = ssub.s32 %s25, %s32
      %s39 = sor.u32 %s37, %s38
      %p40 = scmp.eq.s32.totalorder %s39, 0
      %s42 = sadd.s32 %s41, 1
      %s43 = scalar_select %p40, %s41, %s42
      %p46 = pneg %p40
      %p47 = scmp.eq.s32.totalorder %s17, 1
      %p48 = por %p46, %p47
      %p49 = scmp.ne.s32.totalorder %s41, %s44
      %p50 = scmp.eq.s32.totalorder %s17, 0
      %p51 = por %p49, %p50
      %p52 = scmp.ne.s32.totalorder %s41, %s44
      %p53 = scmp.eq.s32.totalorder %s22, 1
      %p54 = por %p52, %p53
      %p55 = scmp.ne.s32.totalorder %s44, %s45
      %p56 = scmp.eq.s32.totalorder %s22, 0
      %p57 = por %p55, %p56
      %p58 = scmp.ne.s32.totalorder %s44, %s45
      %p59 = scmp.eq.s32.totalorder %s23, 1
      %p60 = por %p58, %p59
      %p62 = scmp.ne.s32.totalorder %s45, %s61
      %p63 = scmp.eq.s32.totalorder %s23, 0
      %p64 = por %p62, %p63
      %s66 = sadd.s32 %s65, 1
      %p69 = scmp.eq.s32.totalorder %s17, 1
      %p70 = scmp.ne.s32.totalorder %s65, %s67
      %p71 = scmp.eq.s32.totalorder %s17, 0
      %p72 = por %p70, %p71
      %p73 = scmp.ne.s32.totalorder %s65, %s67
      %p74 = scmp.eq.s32.totalorder %s22, 1
      %p75 = por %p73, %p74
      %p76 = scmp.ne.s32.totalorder %s67, %s68
      %p77 = scmp.eq.s32.totalorder %s22, 0
      %p78 = por %p76, %p77
      %p79 = scmp.ne.s32.totalorder %s67, %s68
      %p80 = scmp.eq.s32.totalorder %s23, 1
      %p81 = por %p79, %p80
      %p83 = scmp.ne.s32.totalorder %s68, %s82
      %p84 = scmp.eq.s32.totalorder %s23, 0
      %p85 = por %p83, %p84
      %s87 = sadd.s32 %s86, 1
      %p90 = scmp.eq.s32.totalorder %s17, 1
      %p91 = scmp.ne.s32.totalorder %s86, %s88
      %p92 = scmp.eq.s32.totalorder %s17, 0
      %p93 = por %p91, %p92
      %p94 = scmp.ne.s32.totalorder %s86, %s88
      %p95 = scmp.eq.s32.totalorder %s22, 1
      %p96 = por %p94, %p95
      %p97 = scmp.ne.s32.totalorder %s88, %s89
      %p98 = scmp.eq.s32.totalorder %s22, 0
      %p99 = por %p97, %p98
      %p100 = scmp.ne.s32.totalorder %s88, %s89
      %p101 = scmp.eq.s32.totalorder %s23, 1
      %p102 = por %p100, %p101
      %p104 = scmp.ne.s32.totalorder %s89, %s103
      %p105 = scmp.eq.s32.totalorder %s23, 0
      %p106 = por %p104, %p105
      %s108 = sadd.s32 %s107, 1
      %p111 = scmp.eq.s32.totalorder %s17, 1
      %p112 = scmp.ne.s32.totalorder %s107, %s109
      %p113 = scmp.eq.s32.totalorder %s17, 0
      %p114 = por %p112, %p113
      %p115 = scmp.ne.s32.totalorder %s107, %s109
      %p116 = scmp.eq.s32.totalorder %s22, 1
      %p117 = por %p115, %p116
      %p118 = scmp.ne.s32.totalorder %s109, %s110
      %p119 = scmp.eq.s32.totalorder %s22, 0
      %p120 = por %p118, %p119
      %p121 = scmp.ne.s32.totalorder %s109, %s110
      %p122 = scmp.eq.s32.totalorder %s23, 1
      %p123 = por %p121, %p122
      %p125 = scmp.ne.s32.totalorder %s110, %s124
      %p126 = scmp.eq.s32.totalorder %s23, 0
      %p127 = por %p125, %p126
      %s128 = ssub.s32 %s24, %s36
      %s129 = ssub.s32 %s25, %s32
      %s130 = sor.u32 %s128, %s129
      %p131 = scmp.eq.s32.totalorder %s130, 0
      %s133 = sadd.s32 %s132, 1
      %s134 = scalar_select %p131, %s132, %s133
      %p137 = pneg %p131
      %p138 = scmp.eq.s32.totalorder %s17, 1
      %p139 = por %p137, %p138
      %p140 = scmp.ne.s32.totalorder %s132, %s135
      %p141 = scmp.eq.s32.totalorder %s17, 0
      %p142 = por %p140, %p141
      %p143 = scmp.ne.s32.totalorder %s132, %s135
      %p144 = scmp.eq.s32.totalorder %s22, 1
      %p145 = por %p143, %p144
      %p146 = scmp.ne.s32.totalorder %s135, %s136
      %p147 = scmp.eq.s32.totalorder %s22, 0
      %p148 = por %p146, %p147
      %p149 = scmp.ne.s32.totalorder %s135, %s136
      %p150 = scmp.eq.s32.totalorder %s23, 1
      %p151 = por %p149, %p150
      %p153 = scmp.ne.s32.totalorder %s136, %s152
      %p154 = scmp.eq.s32.totalorder %s23, 0
      %p155 = por %p153, %p154
      %p156 = scmp.le.s32.totalorder 1, %s17
      %p157 = scmp.lt.s32.totalorder %s17, 3
      %p158 = pnand %p156, %p157
      %p159 = pneg %p158
      // Predicated region
      $region9: #{tpu_custom_call.1} parent=5 // pred_check
        _
      $region10: #{tpu_custom_call.1} parent=5 // pred_check_branch
        %161 = sbr.rel (%p158) target = $region12
      $region11: #{tpu_custom_call.1} parent=5 // pred_region
        %s162 = ssub.s32 %s17, 1
        // Predicated region
        $region13: #{tpu_custom_call.1} parent=11 // pred_check
          %p163 = pneg %p78
        $region14: #{tpu_custom_call.1} parent=11 // pred_check_branch
          %165 = sbr.rel (%p163) target = $region16
        $region15: #{tpu_custom_call.1} parent=11 // pred_region
          %s167 = ssub.s32 256, 256
          %168 = vsyncadd [#allocation7], %s167
          %s169 = sshll.u32 [#allocation6], 4
          %s170 = int_to_ptr.vmem [resolvable:$true] %s169
          %175 = dma.hbm_to_vmem [thread:$0]  %s1, 256, %s170, [#allocation7], 64, 64, 4
        $region16: #{tpu_custom_call.1} parent=11 // pred_fallthru
          _
        // Predicated region
        $region17: #{tpu_custom_call.1} parent=11 // pred_check
          %p176 = pneg %p99
        $region18: #{tpu_custom_call.1} parent=11 // pred_check_branch
          %178 = sbr.rel (%p176) target = $region20
        $region19: #{tpu_custom_call.1} parent=11 // pred_region
          _
        $region20: #{tpu_custom_call.1} parent=11 // pred_fallthru
          _
        // Predicated region
        $region21: #{tpu_custom_call.1} parent=11 // pred_check
          %p179 = pneg %p120
        $region22: #{tpu_custom_call.1} parent=11 // pred_check_branch
          %181 = sbr.rel (%p179) target = $region24
        $region23: #{tpu_custom_call.1} parent=11 // pred_region
          _
        $region24: #{tpu_custom_call.1} parent=11 // pred_fallthru
          _
      $region12: #{tpu_custom_call.1} parent=5 // pred_fallthru
        _
      %p182 = scmp.lt.s32.totalorder %s17, 2
      // Predicated region
      $region25: #{tpu_custom_call.1} parent=5 // pred_check
        %p183 = pneg %p182
      $region26: #{tpu_custom_call.1} parent=5 // pred_check_branch
        %185 = sbr.rel (%p183) target = $region28
      $region27: #{tpu_custom_call.1} parent=5 // pred_region
        // Predicated region
        $region29: #{tpu_custom_call.1} parent=27 // pred_check
          %p186 = pneg %p51
        $region30: #{tpu_custom_call.1} parent=27 // pred_check_branch
          %188 = sbr.rel (%p186) target = $region32
        $region31: #{tpu_custom_call.1} parent=27 // pred_region
          %s189 = sand.u32 %s41, 1
          %s190 = scalar_lea.sflag [#allocation4], %s189
          %s191 = sand.u32 %s41, 1
          %s192 = smul.addr %s191, 128
          %s193 = scalar_lea.vmem [#allocation3], %s192
          %s194 = smul.u32 16, %s25
          %s196 = ssub.s32 2048, 2048
          %197 = vsyncadd %s190, %s196
          %s198 = smul.addr %s194, 2
          %s199 = smul.addr %s24, 32
          %s200 = sadd.s32 %s198, %s199
          %s201 = smul.addr %s200, 64
          %s202 = scalar_lea.hbm %s0, %s201
          %s203 = sshll.u32 %s193, 4
          %s204 = int_to_ptr.vmem [resolvable:$true] %s203
          %209 = dma.hbm_to_vmem [thread:$0]  %s202, 2048, %s204, %s190, 64, 64, 4
        $region32: #{tpu_custom_call.1} parent=27 // pred_fallthru
          _
      $region28: #{tpu_custom_call.1} parent=5 // pred_fallthru
        _
      %p210 = scmp.le.s32.totalorder 1, %s17
      %p211 = scmp.lt.s32.totalorder %s17, 3
      %p212 = pnand %p210, %p211
      %p213 = pneg %p212
      // Predicated region
      $region33: #{tpu_custom_call.1} parent=5 // pred_check
        _
      $region34: #{tpu_custom_call.1} parent=5 // pred_check_branch
        %215 = sbr.rel (%p212) target = $region36
      $region35: #{tpu_custom_call.1} parent=5 // pred_region
        %s216 = ssub.s32 %s17, 1
        %s217 = sand.u32 %s44, 1
        %s218 = scalar_lea.sflag [#allocation4], %s217
        %s219 = sand.u32 %s44, 1
        %s220 = smul.addr %s219, 128
        %s221 = scalar_lea.vmem [#allocation3], %s220
        // Predicated region
        $region37: #{tpu_custom_call.1} parent=35 // pred_check
          %p222 = pneg %p57
        $region38: #{tpu_custom_call.1} parent=35 // pred_check_branch
          %224 = sbr.rel (%p222) target = $region40
        $region39: #{tpu_custom_call.1} parent=35 // pred_region
          %225 = dma.done %s218, 2048
        $region40: #{tpu_custom_call.1} parent=35 // pred_fallthru
          _
        // Predicated region
        $region41: #{tpu_custom_call.1} parent=35 // pred_check
          %p226 = pneg %p78
        $region42: #{tpu_custom_call.1} parent=35 // pred_check_branch
          %228 = sbr.rel (%p226) target = $region44
        $region43: #{tpu_custom_call.1} parent=35 // pred_region
          %229 = dma.done [#allocation7], 256
        $region44: #{tpu_custom_call.1} parent=35 // pred_fallthru
          _
        %s230 = sand.u32 %s44, 1
        %s231 = scalar_lea.sflag [#allocation4], %s230
        %s232 = sand.u32 %s44, 1
        %s233 = smul.addr %s232, 128
        %s234 = scalar_lea.vmem [#allocation3], %s233
        %p235 = pneg %p57
        %p236 = pneg %p54
        %p237 = pneg %p78
        %p238 = pneg %p75
        %p239 = pneg %p99
        %p240 = pneg %p96
        %p241 = pneg %p120
        %p242 = pneg %p117
        %p243 = pneg %p148
        %p244 = pneg %p145
        %s245 = sand.u32 %s135, 1
        %s246 = scalar_lea.sflag [#allocation5], %s245
        %s247 = sand.u32 %s135, 1
        %s248 = smul.addr %s247, 32
        %s249 = scalar_lea.vmem [#allocation8], %s248
        %s250 = smul.u32 16, %s27
        %s251 = smul.u32 8, %s27
        %v253 = vld [vmem:[%s221] sm:$0xf]
        %v254 = vld [vmem:[%s221 + $0x4] sm:$0xf]
        %v255 = vld [vmem:[%s221 + $0x8] sm:$0xf]
        %v256 = vld [vmem:[%s221 + $0xc] sm:$0xf]
        %v257 = vld [vmem:[%s221 + $0x10] sm:$0xf]
        %v258 = vld [vmem:[%s221 + $0x14] sm:$0xf]
        %v259 = vld [vmem:[%s221 + $0x18] sm:$0xf]
        %v260 = vld [vmem:[%s221 + $0x1c] sm:$0xf]
        %v261 = vld [vmem:[%s221 + $0x20] sm:$0xf]
        %v262 = vld [vmem:[%s221 + $0x24] sm:$0xf]
        %v263 = vld [vmem:[%s221 + $0x28] sm:$0xf]
        %v264 = vld [vmem:[%s221 + $0x2c] sm:$0xf]
        %v265 = vld [vmem:[%s221 + $0x30] sm:$0xf]
        %v266 = vld [vmem:[%s221 + $0x34] sm:$0xf]
        %v267 = vld [vmem:[%s221 + $0x38] sm:$0xf]
        %v268 = vld [vmem:[%s221 + $0x3c] sm:$0xf]
        %v269 = vld [vmem:[%s221 + $0x40] sm:$0xf]
        %v270 = vld [vmem:[%s221 + $0x44] sm:$0xf]
        %v271 = vld [vmem:[%s221 + $0x48] sm:$0xf]
        %v272 = vld [vmem:[%s221 + $0x4c] sm:$0xf]
        %v273 = vld [vmem:[%s221 + $0x50] sm:$0xf]
        %v274 = vld [vmem:[%s221 + $0x54] sm:$0xf]
        %v275 = vld [vmem:[%s221 + $0x58] sm:$0xf]
        %v276 = vld [vmem:[%s221 + $0x5c] sm:$0xf]
        %v277 = vld [vmem:[%s221 + $0x60] sm:$0xf]
        %v278 = vld [vmem:[%s221 + $0x64] sm:$0xf]
        %v279 = vld [vmem:[%s221 + $0x68] sm:$0xf]
        %v280 = vld [vmem:[%s221 + $0x6c] sm:$0xf]
        %v281 = vld [vmem:[%s221 + $0x70] sm:$0xf]
        %v282 = vld [vmem:[%s221 + $0x74] sm:$0xf]
        %v283 = vld [vmem:[%s221 + $0x78] sm:$0xf]
        %v284 = vld [vmem:[%s221 + $0x7c] sm:$0xf]
        %v285 = vld [vmem:[#allocation6] sm:$0xf]
        %v286 = vld [vmem:[#allocation6 + $0x4] sm:$0xf]
        %v287 = vld [vmem:[#allocation6 + $0x8] sm:$0xf]
        %v288 = vld [vmem:[#allocation6 + $0xc] sm:$0x3]
        %v321 = vunpack.c.l.b16 %v253
        %v322 = vunpack.c.l.b16 %v254
        %v323 = vunpack.c.l.b16 %v255
        %v324 = vunpack.c.l.b16 %v256
        %v325 = vunpack.c.l.b16 %v257
        %v326 = vunpack.c.l.b16 %v258
        %v327 = vunpack.c.l.b16 %v259
        %v328 = vunpack.c.l.b16 %v260
        %v329 = vunpack.c.l.b16 %v261
        %v330 = vunpack.c.l.b16 %v262
        %v331 = vunpack.c.l.b16 %v263
        %v332 = vunpack.c.l.b16 %v264
        %v333 = vunpack.c.l.b16 %v265
        %v334 = vunpack.c.l.b16 %v266
        %v335 = vunpack.c.l.b16 %v267
        %v336 = vunpack.c.l.b16 %v268
        %v337 = vunpack.c.l.b16 %v269
        %v338 = vunpack.c.l.b16 %v270
        %v339 = vunpack.c.l.b16 %v271
        %v340 = vunpack.c.l.b16 %v272
        %v341 = vunpack.c.l.b16 %v273
        %v342 = vunpack.c.l.b16 %v274
        %v343 = vunpack.c.l.b16 %v275
        %v344 = vunpack.c.l.b16 %v276
        %v345 = vunpack.c.l.b16 %v277
        %v346 = vunpack.c.l.b16 %v278
        %v347 = vunpack.c.l.b16 %v279
        %v348 = vunpack.c.l.b16 %v280
        %v349 = vunpack.c.l.b16 %v281
        %v350 = vunpack.c.l.b16 %v282
        %v351 = vunpack.c.l.b16 %v283
        %v352 = vunpack.c.l.b16 %v284
        %v353 = vpack.c.b16 %v322, %v321
        %v354 = vpack.c.b16 %v324, %v323
        %v355 = vpack.c.b16 %v326, %v325
        %v356 = vpack.c.b16 %v328, %v327
        %v357 = vpack.c.b16 %v330, %v329
        %v358 = vpack.c.b16 %v332, %v331
        %v359 = vpack.c.b16 %v334, %v333
        %v360 = vpack.c.b16 %v336, %v335
        %v361 = vpack.c.b16 %v338, %v337
        %v362 = vpack.c.b16 %v340, %v339
        %v363 = vpack.c.b16 %v342, %v341
        %v364 = vpack.c.b16 %v344, %v343
        %v365 = vpack.c.b16 %v346, %v345
        %v366 = vpack.c.b16 %v348, %v347
        %v367 = vpack.c.b16 %v350, %v349
        %v368 = vpack.c.b16 %v352, %v351
        %v373 = vunpack.c.l.b16 %v285
        %v374 = vunpack.c.l.b16 %v286
        %v375 = vunpack.c.l.b16 %v287
        %v376 = vunpack.c.l.b16 %v288
        %v377 = vpack.c.b16 %v374, %v373
        %v378 = vpack.c.b16 %v376, %v375
        %vm380 = vcmask 220160
        %v382 = vsel %vm380, %v353, 0
        %v385 = vsel %vm380, %v354, 0
        %v388 = vsel %vm380, %v355, 0
        %v391 = vsel %vm380, %v356, 0
        %v394 = vsel %vm380, %v357, 0
        %v397 = vsel %vm380, %v358, 0
        %v400 = vsel %vm380, %v359, 0
        %v403 = vsel %vm380, %v360, 0
        %v406 = vsel %vm380, %v361, 0
        %v409 = vsel %vm380, %v362, 0
        %v412 = vsel %vm380, %v363, 0
        %v415 = vsel %vm380, %v364, 0
        %v418 = vsel %vm380, %v365, 0
        %v421 = vsel %vm380, %v366, 0
        %v424 = vsel %vm380, %v367, 0
        %v427 = vsel %vm380, %v368, 0
        %vm429 = vcmask 1044480
        %vm430 = vcmask 1045504
        %v431 = vsel %vm429, 4294967295, 65535
        %v432 = vsel %vm430, %v431, 0
        %v434 = vand.u32 %v378, %v432
        %436 = vmatprep.subr.bf16.mxu0 0
        %437 = vmatpush1.bf16.msra.mxu0 %v377
        %438 = vmatprep.subr.bf16.mxu0 0
        %439 = vmatpush1.bf16.msra.mxu0 %v434
        %440 = vmatprep.subr.bf16.mxu0 0
        %441 = vmatpush1.bf16.msra.mxu0 0
        %442 = vmatprep.subr.bf16.mxu0 0
        %443 = vmatpush1.bf16.msra.mxu0 0
        %444 = vmatprep.subr.bf16.mxu0 0
        %445 = vmatpush1.bf16.msra.mxu0 0
        %446 = vmatprep.subr.bf16.mxu0 0
        %447 = vmatpush1.bf16.msra.mxu0 0
        %448 = vmatprep.subr.bf16.mxu0 0
        %449 = vmatpush1.bf16.msra.mxu0 0
        %450 = vmatprep.subr.bf16.mxu0 0
        %451 = vmatpush1.bf16.msra.mxu0 0
        %452 = vmatprep.subr.bf16.mxu0 0
        %453 = vmatpush1.bf16.msra.mxu0 0
        %454 = vmatprep.subr.bf16.mxu0 0
        %455 = vmatpush1.bf16.msra.mxu0 0
        %456 = vmatprep.subr.bf16.mxu0 0
        %457 = vmatpush1.bf16.msra.mxu0 0
        %458 = vmatprep.subr.bf16.mxu0 0
        %459 = vmatpush1.bf16.msra.mxu0 0
        %460 = vmatprep.subr.bf16.mxu0 0
        %461 = vmatpush1.bf16.msra.mxu0 0
        %462 = vmatprep.subr.bf16.mxu0 0
        %463 = vmatpush1.bf16.msra.mxu0 0
        %464 = vmatprep.subr.bf16.mxu0 0
        %465 = vmatpush1.bf16.msra.mxu0 0
        %466 = vmatprep.subr.bf16.mxu0 0
        %467 = vmatpush1.bf16.msra.mxu0 0
        %468 = vmatprep.mubr.bf16.mxu0 0
        %469 = vmatmul.mubr.bf16.gmra.mrb[0].mxu0 %v382
        %v470 = vpop.f32.mrb[0].mxu0
        %v471 = vadd.f32 0.0, %v470
        %v472 = vpop.f32.mrb[0].mxu0
        %v473 = vpop.f32.mrb[0].mxu0
        %v474 = vadd.f32 0.0, %v473
        %v475 = vpop.f32.mrb[0].mxu0
        %476 = vmatprep.mubr.bf16.mxu0 0
        %477 = vmatmul.mubr.bf16.gmra.mrb[0].mxu0 %v385
        %v478 = vpop.f32.mrb[0].mxu0
        %v479 = vadd.f32 0.0, %v478
        %v480 = vpop.f32.mrb[0].mxu0
        %v481 = vpop.f32.mrb[0].mxu0
        %v482 = vadd.f32 0.0, %v481
        %v483 = vpop.f32.mrb[0].mxu0
        %484 = vmatprep.mubr.bf16.mxu0 0
        %485 = vmatmul.mubr.bf16.gmra.mrb[0].mxu0 %v388
        %v486 = vpop.f32.mrb[0].mxu0
        %v487 = vadd.f32 0.0, %v486
        %v488 = vpop.f32.mrb[0].mxu0
        %v489 = vpop.f32.mrb[0].mxu0
        %v490 = vadd.f32 0.0, %v489
        %v491 = vpop.f32.mrb[0].mxu0
        %492 = vmatprep.mubr.bf16.mxu0 0
        %493 = vmatmul.mubr.bf16.gmra.mrb[0].mxu0 %v391
        %v494 = vpop.f32.mrb[0].mxu0
        %v495 = vadd.f32 0.0, %v494
        %v496 = vpop.f32.mrb[0].mxu0
        %v497 = vpop.f32.mrb[0].mxu0
        %v498 = vadd.f32 0.0, %v497
        %v499 = vpop.f32.mrb[0].mxu0
        %500 = vmatprep.mubr.bf16.mxu0 0
        %501 = vmatmul.mubr.bf16.gmra.mrb[0].mxu0 %v394
        %v502 = vpop.f32.mrb[0].mxu0
        %v503 = vadd.f32 0.0, %v502
        %v504 = vpop.f32.mrb[0].mxu0
        %v505 = vpop.f32.mrb[0].mxu0
        %v506 = vadd.f32 0.0, %v505
        %v507 = vpop.f32.mrb[0].mxu0
        %508 = vmatprep.mubr.bf16.mxu0 0
        %509 = vmatmul.mubr.bf16.gmra.mrb[0].mxu0 %v397
        %v510 = vpop.f32.mrb[0].mxu0
        %v511 = vadd.f32 0.0, %v510
        %v512 = vpop.f32.mrb[0].mxu0
        %v513 = vpop.f32.mrb[0].mxu0
        %v514 = vadd.f32 0.0, %v513
        %v515 = vpop.f32.mrb[0].mxu0
        %516 = vmatprep.mubr.bf16.mxu0 0
        %517 = vmatmul.mubr.bf16.gmra.mrb[0].mxu0 %v400
        %v518 = vpop.f32.mrb[0].mxu0
        %v519 = vadd.f32 0.0, %v518
        %v520 = vpop.f32.mrb[0].mxu0
        %v521 = vpop.f32.mrb[0].mxu0
        %v522 = vadd.f32 0.0, %v521
        %v523 = vpop.f32.mrb[0].mxu0
        %524 = vmatprep.mubr.bf16.mxu0 0
        %525 = vmatmul.mubr.bf16.gmra.mrb[0].mxu0 %v403
        %v526 = vpop.f32.mrb[0].mxu0
        %v527 = vadd.f32 0.0, %v526
        %v528 = vpop.f32.mrb[0].mxu0
        %v529 = vpop.f32.mrb[0].mxu0
        %v530 = vadd.f32 0.0, %v529
        %v531 = vpop.f32.mrb[0].mxu0
        %532 = vmatprep.mubr.bf16.mxu0 0
        %533 = vmatmul.mubr.bf16.gmra.mrb[0].mxu0 %v406
        %v534 = vpop.f32.mrb[0].mxu0
        %v535 = vadd.f32 0.0, %v534
        %v536 = vpop.f32.mrb[0].mxu0
        %v537 = vpop.f32.mrb[0].mxu0
        %v538 = vadd.f32 0.0, %v537
        %v539 = vpop.f32.mrb[0].mxu0
        %540 = vmatprep.mubr.bf16.mxu0 0
        %541 = vmatmul.mubr.bf16.gmra.mrb[0].mxu0 %v409
        %v542 = vpop.f32.mrb[0].mxu0
        %v543 = vadd.f32 0.0, %v542
        %v544 = vpop.f32.mrb[0].mxu0
        %v545 = vpop.f32.mrb[0].mxu0
        %v546 = vadd.f32 0.0, %v545
        %v547 = vpop.f32.mrb[0].mxu0
        %548 = vmatprep.mubr.bf16.mxu0 0
        %549 = vmatmul.mubr.bf16.gmra.mrb[0].mxu0 %v412
        %v550 = vpop.f32.mrb[0].mxu0
        %v551 = vadd.f32 0.0, %v550
        %v552 = vpop.f32.mrb[0].mxu0
        %v553 = vpop.f32.mrb[0].mxu0
        %v554 = vadd.f32 0.0, %v553
        %v555 = vpop.f32.mrb[0].mxu0
        %556 = vmatprep.mubr.bf16.mxu0 0
        %557 = vmatmul.mubr.bf16.gmra.mrb[0].mxu0 %v415
        %v558 = vpop.f32.mrb[0].mxu0
        %v559 = vadd.f32 0.0, %v558
        %v560 = vpop.f32.mrb[0].mxu0
        %v561 = vpop.f32.mrb[0].mxu0
        %v562 = vadd.f32 0.0, %v561
        %v563 = vpop.f32.mrb[0].mxu0
        %564 = vmatprep.mubr.bf16.mxu0 0
        %565 = vmatmul.mubr.bf16.gmra.mrb[0].mxu0 %v418
        %v566 = vpop.f32.mrb[0].mxu0
        %v567 = vadd.f32 0.0, %v566
        %v568 = vpop.f32.mrb[0].mxu0
        %v569 = vpop.f32.mrb[0].mxu0
        %v570 = vadd.f32 0.0, %v569
        %v571 = vpop.f32.mrb[0].mxu0
        %572 = vmatprep.mubr.bf16.mxu0 0
        %573 = vmatmul.mubr.bf16.gmra.mrb[0].mxu0 %v421
        %v574 = vpop.f32.mrb[0].mxu0
        %v575 = vadd.f32 0.0, %v574
        %v576 = vpop.f32.mrb[0].mxu0
        %v577 = vpop.f32.mrb[0].mxu0
        %v578 = vadd.f32 0.0, %v577
        %v579 = vpop.f32.mrb[0].mxu0
        %580 = vmatprep.mubr.bf16.mxu0 0
        %581 = vmatmul.mubr.bf16.gmra.mrb[0].mxu0 %v424
        %v582 = vpop.f32.mrb[0].mxu0
        %v583 = vadd.f32 0.0, %v582
        %v584 = vpop.f32.mrb[0].mxu0
        %v585 = vpop.f32.mrb[0].mxu0
        %v586 = vadd.f32 0.0, %v585
        %v587 = vpop.f32.mrb[0].mxu0
        %588 = vmatprep.mubr.bf16.mxu0 0
        %589 = vmatmul.mubr.bf16.gmra.mrb[0].mxu0 %v427
        %v590 = vpop.f32.mrb[0].mxu0
        %v591 = vadd.f32 0.0, %v590
        %v592 = vpop.f32.mrb[0].mxu0
        %v593 = vpop.f32.mrb[0].mxu0
        %v594 = vadd.f32 0.0, %v593
        %v595 = vpop.f32.mrb[0].mxu0
        %596 = vdwg.mxu0
        %v597 = vld [vmem:[%s2] sm:$0x1]
        %v599 = vlaneseq
        %v600 = vshrl.u32 %v599, 7
        %v601 = vsub.s32 0, %v600
        %v602 = vrot.slane %v597, %v601
        %v604 = vmul.f32 %v471, %v602
        %v605 = vmul.f32 %v474, %v602
        %v606 = vmul.f32 %v479, %v602
        %v607 = vmul.f32 %v482, %v602
        %v608 = vmul.f32 %v487, %v602
        %v609 = vmul.f32 %v490, %v602
        %v610 = vmul.f32 %v495, %v602
        %v611 = vmul.f32 %v498, %v602
        %v612 = vmul.f32 %v503, %v602
        %v613 = vmul.f32 %v506, %v602
        %v614 = vmul.f32 %v511, %v602
        %v615 = vmul.f32 %v514, %v602
        %v616 = vmul.f32 %v519, %v602
        %v617 = vmul.f32 %v522, %v602
        %v618 = vmul.f32 %v527, %v602
        %v619 = vmul.f32 %v530, %v602
        %v620 = vmul.f32 %v535, %v602
        %v621 = vmul.f32 %v538, %v602
        %v622 = vmul.f32 %v543, %v602
        %v623 = vmul.f32 %v546, %v602
        %v624 = vmul.f32 %v551, %v602
        %v625 = vmul.f32 %v554, %v602
        %v626 = vmul.f32 %v559, %v602
        %v627 = vmul.f32 %v562, %v602
        %v628 = vmul.f32 %v567, %v602
        %v629 = vmul.f32 %v570, %v602
        %v630 = vmul.f32 %v575, %v602
        %v631 = vmul.f32 %v578, %v602
        %v632 = vmul.f32 %v583, %v602
        %v633 = vmul.f32 %v586, %v602
        %v634 = vmul.f32 %v591, %v602
        %v635 = vmul.f32 %v594, %v602
        %v636 = vld [vmem:[%s3] sm:$0x1]
        %v638 = vlaneseq
        %v639 = vshrl.u32 %v638, 7
        %v640 = vsub.s32 0, %v639
        %v641 = vrot.slane %v636, %v640
        %v643 = vadd.f32 %v604, %v641
        %v644 = vadd.f32 %v605, %v641
        %v645 = vadd.f32 %v606, %v641
        %v646 = vadd.f32 %v607, %v641
        %v647 = vadd.f32 %v608, %v641
        %v648 = vadd.f32 %v609, %v641
        %v649 = vadd.f32 %v610, %v641
        %v650 = vadd.f32 %v611, %v641
        %v651 = vadd.f32 %v612, %v641
        %v652 = vadd.f32 %v613, %v641
        %v653 = vadd.f32 %v614, %v641
        %v654 = vadd.f32 %v615, %v641
        %v655 = vadd.f32 %v616, %v641
        %v656 = vadd.f32 %v617, %v641
        %v657 = vadd.f32 %v618, %v641
        %v658 = vadd.f32 %v619, %v641
        %v659 = vadd.f32 %v620, %v641
        %v660 = vadd.f32 %v621, %v641
        %v661 = vadd.f32 %v622, %v641
        %v662 = vadd.f32 %v623, %v641
        %v663 = vadd.f32 %v624, %v641
        %v664 = vadd.f32 %v625, %v641
        %v665 = vadd.f32 %v626, %v641
        %v666 = vadd.f32 %v627, %v641
        %v667 = vadd.f32 %v628, %v641
        %v668 = vadd.f32 %v629, %v641
        %v669 = vadd.f32 %v630, %v641
        %v670 = vadd.f32 %v631, %v641
        %v671 = vadd.f32 %v632, %v641
        %v672 = vadd.f32 %v633, %v641
        %v673 = vadd.f32 %v634, %v641
        %v674 = vadd.f32 %v635, %v641
        %v675 = vmax.f32 %v643, 0.0
        %v676 = vmax.f32 %v644, 0.0
        %v677 = vmax.f32 %v645, 0.0
        %v678 = vmax.f32 %v646, 0.0
        %v679 = vmax.f32 %v647, 0.0
        %v680 = vmax.f32 %v648, 0.0
        %v681 = vmax.f32 %v649, 0.0
        %v682 = vmax.f32 %v650, 0.0
        %v683 = vmax.f32 %v651, 0.0
        %v684 = vmax.f32 %v652, 0.0
        %v685 = vmax.f32 %v653, 0.0
        %v686 = vmax.f32 %v654, 0.0
        %v687 = vmax.f32 %v655, 0.0
        %v688 = vmax.f32 %v656, 0.0
        %v689 = vmax.f32 %v657, 0.0
        %v690 = vmax.f32 %v658, 0.0
        %v691 = vmax.f32 %v659, 0.0
        %v692 = vmax.f32 %v660, 0.0
        %v693 = vmax.f32 %v661, 0.0
        %v694 = vmax.f32 %v662, 0.0
        %v695 = vmax.f32 %v663, 0.0
        %v696 = vmax.f32 %v664, 0.0
        %v697 = vmax.f32 %v665, 0.0
        %v698 = vmax.f32 %v666, 0.0
        %v699 = vmax.f32 %v667, 0.0
        %v700 = vmax.f32 %v668, 0.0
        %v701 = vmax.f32 %v669, 0.0
        %v702 = vmax.f32 %v670, 0.0
        %v703 = vmax.f32 %v671, 0.0
        %v704 = vmax.f32 %v672, 0.0
        %v705 = vmax.f32 %v673, 0.0
        %v706 = vmax.f32 %v674, 0.0
        %vm707 = vcmask 261120
        %708 = vst.msk [vmem:[#allocation2] sm:$0xff] %vm707, %v675
        %709 = vst.msk [vmem:[#allocation2 + $0x8] sm:$0xff] %vm707, %v676
        %710 = vst.msk [vmem:[#allocation2 + $0x10] sm:$0xff] %vm707, %v677
        %711 = vst.msk [vmem:[#allocation2 + $0x18] sm:$0xff] %vm707, %v678
        %712 = vst.msk [vmem:[#allocation2 + $0x20] sm:$0xff] %vm707, %v679
        %713 = vst.msk [vmem:[#allocation2 + $0x28] sm:$0xff] %vm707, %v680
        %714 = vst.msk [vmem:[#allocation2 + $0x30] sm:$0xff] %vm707, %v681
        %715 = vst.msk [vmem:[#allocation2 + $0x38] sm:$0xff] %vm707, %v682
        %716 = vst.msk [vmem:[#allocation2 + $0x40] sm:$0xff] %vm707, %v683
        %717 = vst.msk [vmem:[#allocation2 + $0x48] sm:$0xff] %vm707, %v684
        %718 = vst.msk [vmem:[#allocation2 + $0x50] sm:$0xff] %vm707, %v685
        %719 = vst.msk [vmem:[#allocation2 + $0x58] sm:$0xff] %vm707, %v686
        %720 = vst.msk [vmem:[#allocation2 + $0x60] sm:$0xff] %vm707, %v687
        %721 = vst.msk [vmem:[#allocation2 + $0x68] sm:$0xff] %vm707, %v688
        %722 = vst.msk [vmem:[#allocation2 + $0x70] sm:$0xff] %vm707, %v689
        %723 = vst.msk [vmem:[#allocation2 + $0x78] sm:$0xff] %vm707, %v690
        %724 = vst.msk [vmem:[#allocation2 + $0x80] sm:$0xff] %vm707, %v691
        %725 = vst.msk [vmem:[#allocation2 + $0x88] sm:$0xff] %vm707, %v692
        %726 = vst.msk [vmem:[#allocation2 + $0x90] sm:$0xff] %vm707, %v693
        %727 = vst.msk [vmem:[#allocation2 + $0x98] sm:$0xff] %vm707, %v694
        %728 = vst.msk [vmem:[#allocation2 + $0xa0] sm:$0xff] %vm707, %v695
        %729 = vst.msk [vmem:[#allocation2 + $0xa8] sm:$0xff] %vm707, %v696
        %730 = vst.msk [vmem:[#allocation2 + $0xb0] sm:$0xff] %vm707, %v697
        %731 = vst.msk [vmem:[#allocation2 + $0xb8] sm:$0xff] %vm707, %v698
        %732 = vst.msk [vmem:[#allocation2 + $0xc0] sm:$0xff] %vm707, %v699
        %733 = vst.msk [vmem:[#allocation2 + $0xc8] sm:$0xff] %vm707, %v700
        %734 = vst.msk [vmem:[#allocation2 + $0xd0] sm:$0xff] %vm707, %v701
        %735 = vst.msk [vmem:[#allocation2 + $0xd8] sm:$0xff] %vm707, %v702
        %736 = vst.msk [vmem:[#allocation2 + $0xe0] sm:$0xff] %vm707, %v703
        %737 = vst.msk [vmem:[#allocation2 + $0xe8] sm:$0xff] %vm707, %v704
        %738 = vst.msk [vmem:[#allocation2 + $0xf0] sm:$0xff] %vm707, %v705
        %739 = vst.msk [vmem:[#allocation2 + $0xf8] sm:$0xff] %vm707, %v706
        %v740 = vld [vmem:[#allocation2] ss:$2 sm:$0xff]
        %s741 = scalar_lea.vmem [#allocation2], 16
        %v742 = vld [vmem:[%s741] ss:$2 sm:$0xff]
        %s743 = scalar_lea.vmem [#allocation2], 32
        %v744 = vld [vmem:[%s743] ss:$2 sm:$0xff]
        %s745 = scalar_lea.vmem [#allocation2], 48
        %v746 = vld [vmem:[%s745] ss:$2 sm:$0xff]
        %s747 = scalar_lea.vmem [#allocation2], 64
        %v748 = vld [vmem:[%s747] ss:$2 sm:$0xff]
        %s749 = scalar_lea.vmem [#allocation2], 80
        %v750 = vld [vmem:[%s749] ss:$2 sm:$0xff]
        %s751 = scalar_lea.vmem [#allocation2], 96
        %v752 = vld [vmem:[%s751] ss:$2 sm:$0xff]
        %s753 = scalar_lea.vmem [#allocation2], 112
        %v754 = vld [vmem:[%s753] ss:$2 sm:$0xff]
        %s755 = scalar_lea.vmem [#allocation2], 128
        %v756 = vld [vmem:[%s755] ss:$2 sm:$0xff]
        %s757 = scalar_lea.vmem [#allocation2], 144
        %v758 = vld [vmem:[%s757] ss:$2 sm:$0xff]
        %s759 = scalar_lea.vmem [#allocation2], 160
        %v760 = vld [vmem:[%s759] ss:$2 sm:$0xff]
        %s761 = scalar_lea.vmem [#allocation2], 176
        %v762 = vld [vmem:[%s761] ss:$2 sm:$0xff]
        %s763 = scalar_lea.vmem [#allocation2], 192
        %v764 = vld [vmem:[%s763] ss:$2 sm:$0xff]
        %s765 = scalar_lea.vmem [#allocation2], 208
        %v766 = vld [vmem:[%s765] ss:$2 sm:$0xff]
        %s767 = scalar_lea.vmem [#allocation2], 224
        %v768 = vld [vmem:[%s767] ss:$2 sm:$0xff]
        %s769 = scalar_lea.vmem [#allocation2], 240
        %v770 = vld [vmem:[%s769] ss:$2 sm:$0xff]
        %s771 = scalar_lea.vmem [#allocation2], 1
        %v772 = vld [vmem:[%s771] ss:$2 sm:$0xff]
        %s773 = scalar_lea.vmem [#allocation2], 17
        %v774 = vld [vmem:[%s773] ss:$2 sm:$0xff]
        %s775 = scalar_lea.vmem [#allocation2], 33
        %v776 = vld [vmem:[%s775] ss:$2 sm:$0xff]
        %s777 = scalar_lea.vmem [#allocation2], 49
        %v778 = vld [vmem:[%s777] ss:$2 sm:$0xff]
        %s779 = scalar_lea.vmem [#allocation2], 65
        %v780 = vld [vmem:[%s779] ss:$2 sm:$0xff]
        %s781 = scalar_lea.vmem [#allocation2], 81
        %v782 = vld [vmem:[%s781] ss:$2 sm:$0xff]
        %s783 = scalar_lea.vmem [#allocation2], 97
        %v784 = vld [vmem:[%s783] ss:$2 sm:$0xff]
        %s785 = scalar_lea.vmem [#allocation2], 113
        %v786 = vld [vmem:[%s785] ss:$2 sm:$0xff]
        %s787 = scalar_lea.vmem [#allocation2], 129
        %v788 = vld [vmem:[%s787] ss:$2 sm:$0xff]
        %s789 = scalar_lea.vmem [#allocation2], 145
        %v790 = vld [vmem:[%s789] ss:$2 sm:$0xff]
        %s791 = scalar_lea.vmem [#allocation2], 161
        %v792 = vld [vmem:[%s791] ss:$2 sm:$0xff]
        %s793 = scalar_lea.vmem [#allocation2], 177
        %v794 = vld [vmem:[%s793] ss:$2 sm:$0xff]
        %s795 = scalar_lea.vmem [#allocation2], 193
        %v796 = vld [vmem:[%s795] ss:$2 sm:$0xff]
        %s797 = scalar_lea.vmem [#allocation2], 209
        %v798 = vld [vmem:[%s797] ss:$2 sm:$0xff]
        %s799 = scalar_lea.vmem [#allocation2], 225
        %v800 = vld [vmem:[%s799] ss:$2 sm:$0xff]
        %s801 = scalar_lea.vmem [#allocation2], 241
        %v802 = vld [vmem:[%s801] ss:$2 sm:$0xff]
        %v803 = vmax.f32 %v740, %v772
        %v804 = vmax.f32 %v742, %v774
        %v805 = vmax.f32 %v744, %v776
        %v806 = vmax.f32 %v746, %v778
        %v807 = vmax.f32 %v748, %v780
        %v808 = vmax.f32 %v750, %v782
        %v809 = vmax.f32 %v752, %v784
        %v810 = vmax.f32 %v754, %v786
        %v811 = vmax.f32 %v756, %v788
        %v812 = vmax.f32 %v758, %v790
        %v813 = vmax.f32 %v760, %v792
        %v814 = vmax.f32 %v762, %v794
        %v815 = vmax.f32 %v764, %v796
        %v816 = vmax.f32 %v766, %v798
        %v817 = vmax.f32 %v768, %v800
        %v818 = vmax.f32 %v770, %v802
        %v819 = vmax.f32 %v803, %v804
        %v820 = vmax.f32 %v805, %v806
        %v821 = vmax.f32 %v807, %v808
        %v822 = vmax.f32 %v809, %v810
        %v823 = vmax.f32 %v811, %v812
        %v824 = vmax.f32 %v813, %v814
        %v825 = vmax.f32 %v815, %v816
        %v826 = vmax.f32 %v817, %v818
        %v827 = vpack.c.bf16 %v819, %v819
        %v828 = vpack.c.bf16 %v820, %v820
        %v829 = vpack.c.bf16 %v821, %v821
        %v830 = vpack.c.bf16 %v822, %v822
        %v831 = vpack.c.bf16 %v823, %v823
        %v832 = vpack.c.bf16 %v824, %v824
        %v833 = vpack.c.bf16 %v825, %v825
        %v834 = vpack.c.bf16 %v826, %v826
        %vm835 = vcmask 257024
        %836 = vst.msk [vmem:[%s249] sm:$0xf] %vm835, %v827
        %837 = vst.msk [vmem:[%s249 + $0x4] sm:$0xf] %vm835, %v828
        %838 = vst.msk [vmem:[%s249 + $0x8] sm:$0xf] %vm835, %v829
        %839 = vst.msk [vmem:[%s249 + $0xc] sm:$0xf] %vm835, %v830
        %840 = vst.msk [vmem:[%s249 + $0x10] sm:$0xf] %vm835, %v831
        %841 = vst.msk [vmem:[%s249 + $0x14] sm:$0xf] %vm835, %v832
        %842 = vst.msk [vmem:[%s249 + $0x18] sm:$0xf] %vm835, %v833
        %843 = vst.msk [vmem:[%s249 + $0x1c] sm:$0xf] %vm835, %v834
        %s844 = sand.u32 %s135, 1
        %s845 = scalar_lea.sflag [#allocation5], %s844
        %s846 = sand.u32 %s135, 1
        %s847 = smul.addr %s846, 32
        %s848 = scalar_lea.vmem [#allocation8], %s847
        // Predicated region
        $region45: #{tpu_custom_call.1} parent=35 // pred_check
          %p849 = pneg %p145
        $region46: #{tpu_custom_call.1} parent=35 // pred_check_branch
          %851 = sbr.rel (%p849) target = $region48
        $region47: #{tpu_custom_call.1} parent=35 // pred_region
          %s852 = smul.u32 8, %s27
          %s854 = ssub.s32 512, 512
          %855 = vsyncadd %s845, %s854
          %s856 = smul.addr %s26, 8
          %s857 = sadd.s32 %s852, %s856
          %s858 = smul.addr %s857, 64
          %s859 = scalar_lea.hbm %s4, %s858
          %s860 = sshll.u32 %s848, 4
          %s861 = int_to_ptr.vmem [resolvable:$true] %s860
          %866 = dma.vmem_to_hbm [thread:$0]  %s861, 512, %s859, %s845, 64, 64, 4
        $region48: #{tpu_custom_call.1} parent=35 // pred_fallthru
          _
      $region36: #{tpu_custom_call.1} parent=5 // pred_fallthru
        _
      %p867 = scmp.le.s32.totalorder 2, %s17
      // Predicated region
      $region49: #{tpu_custom_call.1} parent=5 // pred_check
        %p868 = pneg %p867
      $region50: #{tpu_custom_call.1} parent=5 // pred_check_branch
        %870 = sbr.rel (%p868) target = $region52
      $region51: #{tpu_custom_call.1} parent=5 // pred_region
        %s871 = ssub.s32 %s17, 2
        // Predicated region
        $region53: #{tpu_custom_call.1} parent=51 // pred_check
          %p872 = pneg %p151
        $region54: #{tpu_custom_call.1} parent=51 // pred_check_branch
          %874 = sbr.rel (%p872) target = $region56
        $region55: #{tpu_custom_call.1} parent=51 // pred_region
          %s875 = sand.u32 %s136, 1
          %s876 = scalar_lea.sflag [#allocation5], %s875
          %s877 = sand.u32 %s136, 1
          %s878 = smul.addr %s877, 32
          %s879 = scalar_lea.vmem [#allocation8], %s878
          %880 = dma.done %s876, 512
        $region56: #{tpu_custom_call.1} parent=51 // pred_fallthru
          _
      $region52: #{tpu_custom_call.1} parent=5 // pred_fallthru
        _
    $region6: #{tpu_custom_call.1} parent=1 // loop_footer
      %s21 = sadd.s32 1, %s17
    $region7: #{tpu_custom_call.1} parent=1 // loop_footer_branch
      %16 = sbr.rel target = $region3
    $region8: #{tpu_custom_call.1} parent=1 // loop_exit
      _
    %881 = vsyncpa [#allocation4], 1
    %s882 = scalar_lea.sflag [#allocation4], 1
    %883 = vsyncpa %s882, 1
    %884 = vsyncpa [#allocation7], 1
    %885 = vsyncpa [#allocation5], 1
    %s886 = scalar_lea.sflag [#allocation5], 1
    %887 = vsyncpa %s886, 1

</llo_original>
